<compile_context>
chip_gen: v5e
topology: v5e:2x2
jax: 0.10.0
libtpu: 0.0.40
codegen_flags: <defaults>
</compile_context>

<pallas_src>
import functools

import jax
import jax.numpy as jnp
import numpy as np
from jax.experimental import pallas as pl
from jax.experimental.pallas import tpu as pltpu


# ----------------------------- Pallas kernel ------------------------------- #
def _edge_encoding_kernel(pd_ref, inv_ref, out_ref):
    """pd_ref: VMEM (M, tm, tn) bf16 per-step dot values (0 past the path end);
    inv_ref: VMEM (tm, tn) f32 precomputed 1/len (0 where no path);
    out_ref: VMEM (tm, tn) f32."""
    m = pd_ref.shape[0]

    # Sum the M per-step planes, accumulating in f32.  Two independent partial
    # accumulators keep ILP on chips without f32 FMA (v5e/v6e); the whole chain
    # co-issues with the streaming DMAs.
    acc0 = pd_ref[0].astype(jnp.float32)
    if m == 1:
        out_ref[...] = acc0 * inv_ref[...]
        return
    acc1 = pd_ref[1].astype(jnp.float32)
    for k in range(2, m):
        if k % 2 == 0:
            acc0 = acc0 + pd_ref[k].astype(jnp.float32)
        else:
            acc1 = acc1 + pd_ref[k].astype(jnp.float32)

    # Mean over path length; inv_len is 0 where there is no / an empty path,
    # matching torch.nan_to_num semantics exactly.
    out_ref[...] = (acc0 + acc1) * inv_ref[...]


# ------------------------------ Tile selection ------------------------------ #
def _select_tiles(n_pad, m, bytes_budget=12 << 20):
    """Pick (tm, tn): lane-dense column tile, >= 2 (ideally >= 4) row tiles for
    v7x megacore, double-buffered working set within scoped VMEM everywhere."""
    tn = 128
    for c in (1024, 512, 256, 128):
        if n_pad % c == 0:
            tn = c
            break
    tm = 16  # bf16 min sublane tile is 16
    for min_rows in (4, 2, 1):
        found = False
        for c in (128, 64, 32, 16):
            if n_pad % c == 0 and n_pad // c >= min_rows:
                tm = c
                found = True
                break
        if found:
            break

    # Double-buffered per-step footprint: bf16 planes + f32 inv_len + f32 out.
    def footprint(tm_, tn_):
        return 2 * tm_ * tn_ * (m * 2 + 4 + 4)

    while footprint(tm, tn) > bytes_budget and tn > 128:
        tn //= 2
    while footprint(tm, tn) > bytes_budget and tm > 16:
        tm //= 2
    return tm, tn


# ------------------------------ Host wrapper ------------------------------- #
@functools.partial(jax.jit, static_argnames=("num_nodes",))
def edge_encoding_forward(edge_vector, edge_attr, path_idx, inv_len, *, num_nodes):
    """edge_vector: (M, d) f32 parameter; edge_attr: (E, d) f32;
    path_idx: (M, Np, Np) int32 edge indices (== E where the step is absent);
    inv_len: (Np, Np) f32 precomputed 1/path_len (0 where no path).
    Returns the (num_nodes, num_nodes) f32 edge-encoding matrix."""
    m, d = edge_vector.shape
    e, d2 = edge_attr.shape
    assert d == d2
    mm, n_pad, n_pad2 = path_idx.shape
    assert mm == m and n_pad == n_pad2 and n_pad % 128 == 0
    assert inv_len.shape == (n_pad, n_pad)
    assert num_nodes <= n_pad

    # Tiny (M, E) contraction once per forward (XLA); extra zero row for the
    # pad index so absent steps gather exact zeros.
    step_dot = jnp.dot(edge_vector, edge_attr.T,
                       preferred_element_type=jnp.float32,
                       precision=jax.lax.Precision.HIGHEST)            # (M, E)
    step_dot = jnp.concatenate(
        [step_dot, jnp.zeros((m, 1), jnp.float32)], axis=1)            # (M, E+1)
    step_dot = step_dot.astype(jnp.bfloat16)

    # XLA gather of per-step dot values; bf16 halves the tensor the kernel streams.
    path_dot = jnp.take_along_axis(
        step_dot, path_idx.reshape(m, -1), axis=1).reshape(m, n_pad, n_pad)

    tm, tn = _select_tiles(n_pad, m)
    grid = (n_pad // tm, n_pad // tn)

    out = pl.pallas_call(
        _edge_encoding_kernel,
        out_shape=jax.ShapeDtypeStruct((n_pad, n_pad), jnp.float32),
        grid=grid,
        in_specs=[
            # M bf16 planes, full-M block, lane-dense columns.
            pl.BlockSpec((m, tm, tn), lambda i, j: (0, i, j)),
            # Precomputed reciprocal path lengths.
            pl.BlockSpec((tm, tn), lambda i, j: (i, j)),
        ],
        out_specs=pl.BlockSpec((tm, tn), lambda i, j: (i, j)),
        compiler_params=pltpu.CompilerParams(
            # Row/column tiles are independent -> megacore sharding on v7x,
            # harmless on single-TC v5e/v6e.
            dimension_semantics=("parallel", "parallel"),
        ),
    )(path_dot, inv_len)

    return out[:num_nodes, :num_nodes]


# --------------------- Host-side densification (dict glue) ------------------ #
def densify_edge_paths(edge_paths, num_nodes, max_path_distance, num_edges):
    """Nested dict -> (M, Np, Np) int32 step indices (pad index = num_edges) and
    (Np, Np) f32 reciprocal path lengths, with Np padded to a multiple of 128."""
    assert 1 <= max_path_distance
    n_pad = max(128, ((num_nodes + 127) // 128) * 128)
    pad_idx = num_edges
    path_idx = np.full((max_path_distance, n_pad, n_pad), pad_idx, dtype=np.int32)
    inv_len = np.zeros((n_pad, n_pad), dtype=np.float32)
    for src, dsts in edge_paths.items():
        for dst, path in dsts.items():
            p = list(path)[:max_path_distance]
            if len(p) == 0:
                continue  # torch: mean of empty -> NaN -> nan_to_num -> 0
            inv_len[src, dst] = 1.0 / len(p)
            for k, edge in enumerate(p):
                assert 0 <= edge < num_edges
                path_idx[k, src, dst] = edge
    return path_idx, inv_len, n_pad


# ----------------------------- NumPy reference ------------------------------ #
def reference_edge_encoding(edge_vector_np, edge_attr_np, edge_paths,
                            num_nodes, max_path_distance):
    cij = np.zeros((num_nodes, num_nodes), dtype=np.float32)
    for src in edge_paths:
        for dst in edge_paths[src]:
            p = list(edge_paths[src][dst])[:max_path_distance]
            if len(p) == 0:
                continue
            x1 = edge_vector_np[: len(p)]
            x2 = edge_attr_np[p]
            cij[src, dst] = (x1 * x2).sum(axis=1).mean()
    return cij


if __name__ == "__main__":
    # Small, deterministic example shapes.  num_nodes is intentionally NOT a
    # multiple of 128 to exercise the lane padding path.
    num_nodes = 150          # N
    edge_dim = 8
    max_path_distance = 5    # M
    num_edges = 256          # E

    key = jax.random.PRNGKey(0)
    k1, k2 = jax.random.split(key)
    edge_attr = jax.random.normal(k1, (num_edges, edge_dim), dtype=jnp.float32)
    edge_vector = jax.random.normal(k2, (max_path_distance, edge_dim), dtype=jnp.float32)

    # Deterministic synthetic `edge_paths` dict (same structure the torch module
    # consumes): lengths span 0 .. M+2 to exercise truncation and empty paths.
    edge_paths = {}
    for src in range(0, num_nodes, 3):
        dsts = {}
        for dst in range(src % 5, num_nodes, 7):
            length = (src + 2 * dst) % (max_path_distance + 3)
            dsts[dst] = [(src * 7 + dst * 3 + k) % num_edges for k in range(length)]
        edge_paths[src] = dsts

    edge_attr_np = np.asarray(edge_attr)
    edge_vector_np = np.asarray(edge_vector)

    # TODO(synk): the nested-dict traversal has no device equivalent; it is
    # densified once on the host (indices + reciprocal lengths only).
    path_idx_np, inv_len_np, n_pad = densify_edge_paths(
        edge_paths, num_nodes, max_path_distance, num_edges)

    out = edge_encoding_forward(
        edge_vector, edge_attr,
        jnp.asarray(path_idx_np), jnp.asarray(inv_len_np),
        num_nodes=num_nodes)
    out = jax.block_until_ready(out)

    ref = reference_edge_encoding(
        edge_vector_np, edge_attr_np, edge_paths, num_nodes, max_path_distance)
    # bf16 storage of the per-step dot values loosens tolerances slightly
    # (accumulation stays f32 inside the kernel).
    np.testing.assert_allclose(np.asarray(out), ref, rtol=2e-2, atol=5e-2)

    print("KERNEL_OK")
</pallas_src>

<mosaic_0001>
module attributes {stable_mosaic.version = 11 : i64} {
  func.func @_edge_encoding_kernel(%arg0: i32, %arg1: i32, %arg2: memref<5x64x256xbf16, #tpu.memory_space<vmem>>, %arg3: memref<64x256xf32, #tpu.memory_space<vmem>>, %arg4: memref<64x256xf32, #tpu.memory_space<vmem>>) attributes {dimension_semantics = [#tpu.dimension_semantics<parallel>, #tpu.dimension_semantics<parallel>], iteration_bounds = array<i64: 4, 1>, scalar_prefetch = 0 : i64, scratch_operands = 0 : i64, tpu.core_type = #tpu.core_type<tc>, window_params = [{transform_indices = @transform_0, window_bounds = array<i64: 5, 64, 256>}, {transform_indices = @transform_1, window_bounds = array<i64: 64, 256>}, {transform_indices = @transform_2, window_bounds = array<i64: 64, 256>}]} {
    %c0 = arith.constant 0 : index
    %c0_0 = arith.constant 0 : index
    %c0_1 = arith.constant 0 : index
    %0 = vector.load %arg2[%c0, %c0_0, %c0_1] : memref<5x64x256xbf16, #tpu.memory_space<vmem>>, vector<1x64x256xbf16>
    %1 = vector.shape_cast %0 : vector<1x64x256xbf16> to vector<64x256xbf16>
    %2 = arith.extf %1 : vector<64x256xbf16> to vector<64x256xf32>
    %c1 = arith.constant 1 : index
    %c0_2 = arith.constant 0 : index
    %c0_3 = arith.constant 0 : index
    %3 = vector.load %arg2[%c1, %c0_2, %c0_3] : memref<5x64x256xbf16, #tpu.memory_space<vmem>>, vector<1x64x256xbf16>
    %4 = vector.shape_cast %3 : vector<1x64x256xbf16> to vector<64x256xbf16>
    %5 = arith.extf %4 : vector<64x256xbf16> to vector<64x256xf32>
    %c2 = arith.constant 2 : index
    %c0_4 = arith.constant 0 : index
    %c0_5 = arith.constant 0 : index
    %6 = vector.load %arg2[%c2, %c0_4, %c0_5] : memref<5x64x256xbf16, #tpu.memory_space<vmem>>, vector<1x64x256xbf16>
    %7 = vector.shape_cast %6 : vector<1x64x256xbf16> to vector<64x256xbf16>
    %8 = arith.extf %7 : vector<64x256xbf16> to vector<64x256xf32>
    %9 = arith.addf %2, %8 : vector<64x256xf32>
    %c3 = arith.constant 3 : index
    %c0_6 = arith.constant 0 : index
    %c0_7 = arith.constant 0 : index
    %10 = vector.load %arg2[%c3, %c0_6, %c0_7] : memref<5x64x256xbf16, #tpu.memory_space<vmem>>, vector<1x64x256xbf16>
    %11 = vector.shape_cast %10 : vector<1x64x256xbf16> to vector<64x256xbf16>
    %12 = arith.extf %11 : vector<64x256xbf16> to vector<64x256xf32>
    %13 = arith.addf %5, %12 : vector<64x256xf32>
    %c4 = arith.constant 4 : index
    %c0_8 = arith.constant 0 : index
    %c0_9 = arith.constant 0 : index
    %14 = vector.load %arg2[%c4, %c0_8, %c0_9] : memref<5x64x256xbf16, #tpu.memory_space<vmem>>, vector<1x64x256xbf16>
    %15 = vector.shape_cast %14 : vector<1x64x256xbf16> to vector<64x256xbf16>
    %16 = arith.extf %15 : vector<64x256xbf16> to vector<64x256xf32>
    %17 = arith.addf %9, %16 : vector<64x256xf32>
    %18 = arith.addf %17, %13 : vector<64x256xf32>
    %c0_10 = arith.constant 0 : index
    %c0_11 = arith.constant 0 : index
    %19 = vector.load %arg3[%c0_10, %c0_11] : memref<64x256xf32, #tpu.memory_space<vmem>>, vector<64x256xf32>
    %20 = arith.mulf %18, %19 : vector<64x256xf32>
    %c0_12 = arith.constant 0 : index
    %c0_13 = arith.constant 0 : index
    %21 = vector.load %arg4[%c0_12, %c0_13] : memref<64x256xf32, #tpu.memory_space<vmem>>, vector<64x256xf32>
    tpu.vector_store %arg4[%c0_12, %c0_13], %20 {strides = array<i32>} : memref<64x256xf32, #tpu.memory_space<vmem>>, vector<64x256xf32>,
    return
  }
  func.func @transform_0(%arg0: i32, %arg1: i32) -> (i32, i32, i32) {
    %c0_i32 = arith.constant 0 : i32
    %c0_i32_0 = arith.constant 0 : i32
    return %c0_i32, %arg0, %arg1 : i32, i32, i32
  }
  func.func @transform_1(%arg0: i32, %arg1: i32) -> (i32, i32) {
    %c0_i32 = arith.constant 0 : i32
    return %arg0, %arg1 : i32, i32
  }
  func.func @transform_2(%arg0: i32, %arg1: i32) -> (i32, i32) {
    %c0_i32 = arith.constant 0 : i32
    return %arg0, %arg1 : i32, i32
  }
}

</mosaic_0001>

<llo_original>
// kernel: edge_encoding_forward.1
$region0: #{edge_encoding_forward.1}
  #allocation0 [shape = 'u32[]', space=smem, size = 0x4, offset = 0x4, fixed_abs, tag = 'smem constant byte address 0x4 - core index']
  #allocation1 [shape = 'u32[72,128]{1,0:T(1,128)}', space=vmem, size = 0x9000, scoped, tag = 'internal scratch']
  %s0 = inlined_call_operand.vmem [shape: bf16[5,256,256], index: 0, kind: input, shape index: {}]
  %s1 = inlined_call_operand.vmem [shape: f32[256,256], index: 1, kind: input, shape index: {}]
  %s2 = inlined_call_operand.vmem [shape: f32[256,256], index: 2, kind: output, shape index: {}]
  %s3 = sld [smem:[#allocation0]]
  $region79: #{edge_encoding_forward.1} parent=0
    _
  %s5 = ssub.s32 1, %s3
  %s6 = scalar_select 0, %s5, %s3
  $region1: #{edge_encoding_forward.1} parent=0
    #allocation2 [shape = 'u8[327680]{0}', space=vmem, size = 0x50000, scoped, tag = 'input window, operand 0']
    loop: start=0, step=1, limit=6
    $region2: #{edge_encoding_forward.1} parent=1 // loop_pre_header
      _
    $region3: #{edge_encoding_forward.1} parent=1 // loop_header
      %s8 = sphi 0, %s12
      %p9 = scmp.ge.s32.totalorder %s8, 6
      %s15 = sphi 0, %s27
      %s16 = sphi 0, %s23
      %s17 = sphi 0, %s15
      %s18 = sphi 0, %s16
      %s19 = sphi 0, %s17
      %s20 = sphi 0, %s18
      %s32 = sphi 0, %s34
      %s35 = sphi 0, %s32
      %s36 = sphi 0, %s35
      %s52 = sphi 0, %s36
      %s60 = sphi 0, %s62
      %s63 = sphi 0, %s60
      %s64 = sphi 0, %s63
      %s80 = sphi 0, %s64
      %s88 = sphi 0, %s90
      %s91 = sphi 0, %s88
      %s92 = sphi 0, %s91
      %s108 = sphi 0, %s92
    $region4: #{edge_encoding_forward.1} parent=1 // loop_header_branch
      %11 = sbr.rel (%p9) target = $region8
    $region5: #{edge_encoding_forward.1} parent=1 // loop_body
      %s13 = ssub.s32 %s8, 1
      %s14 = ssub.s32 %s8, 2
      %s21 = sadd.s32 1, %s16
      %p22 = scmp.ge.s32.totalorder %s21, 1
      %s23 = scalar_select %p22, 0, %s21
      %s24 = sadd.s32 1, %s15
      %s25 = scalar_select %p22, %s24, %s15
      %p26 = scmp.ge.s32.totalorder %s25, 4
      %s27 = scalar_select %p26, 0, %s25
      %s28 = ssub.s32 %s15, %s27
      %s29 = ssub.s32 %s16, %s23
      %s30 = sor.u32 %s28, %s29
      %p31 = scmp.eq.s32.totalorder %s30, 0
      %s33 = sadd.s32 %s32, 1
      %s34 = scalar_select %p31, %s32, %s33
      %p37 = pneg %p31
      %p38 = scmp.eq.s32.totalorder %s8, 3
      %p39 = por %p37, %p38
      %p40 = scmp.ne.s32.totalorder %s32, %s35
      %p41 = scmp.eq.s32.totalorder %s8, 0
      %p42 = por %p40, %p41
      %p43 = scmp.ne.s32.totalorder %s32, %s35
      %p44 = scmp.eq.s32.totalorder %s13, 3
      %p45 = por %p43, %p44
      %p46 = scmp.ne.s32.totalorder %s35, %s36
      %p47 = scmp.eq.s32.totalorder %s13, 0
      %p48 = por %p46, %p47
      %p49 = scmp.ne.s32.totalorder %s35, %s36
      %p50 = scmp.eq.s32.totalorder %s14, 3
      %p51 = por %p49, %p50
      %p53 = scmp.ne.s32.totalorder %s36, %s52
      %p54 = scmp.eq.s32.totalorder %s14, 0
      %p55 = por %p53, %p54
      %s56 = ssub.s32 %s15, %s27
      %s57 = ssub.s32 %s16, %s23
      %s58 = sor.u32 %s56, %s57
      %p59 = scmp.eq.s32.totalorder %s58, 0
      %s61 = sadd.s32 %s60, 1
      %s62 = scalar_select %p59, %s60, %s61
      %p65 = pneg %p59
      %p66 = scmp.eq.s32.totalorder %s8, 3
      %p67 = por %p65, %p66
      %p68 = scmp.ne.s32.totalorder %s60, %s63
      %p69 = scmp.eq.s32.totalorder %s8, 0
      %p70 = por %p68, %p69
      %p71 = scmp.ne.s32.totalorder %s60, %s63
      %p72 = scmp.eq.s32.totalorder %s13, 3
      %p73 = por %p71, %p72
      %p74 = scmp.ne.s32.totalorder %s63, %s64
      %p75 = scmp.eq.s32.totalorder %s13, 0
      %p76 = por %p74, %p75
      %p77 = scmp.ne.s32.totalorder %s63, %s64
      %p78 = scmp.eq.s32.totalorder %s14, 3
      %p79 = por %p77, %p78
      %p81 = scmp.ne.s32.totalorder %s64, %s80
      %p82 = scmp.eq.s32.totalorder %s14, 0
      %p83 = por %p81, %p82
      %s84 = ssub.s32 %s15, %s27
      %s85 = ssub.s32 %s16, %s23
      %s86 = sor.u32 %s84, %s85
      %p87 = scmp.eq.s32.totalorder %s86, 0
      %s89 = sadd.s32 %s88, 1
      %s90 = scalar_select %p87, %s88, %s89
      %p93 = pneg %p87
      %p94 = scmp.eq.s32.totalorder %s8, 3
      %p95 = por %p93, %p94
      %p96 = scmp.ne.s32.totalorder %s88, %s91
      %p97 = scmp.eq.s32.totalorder %s8, 0
      %p98 = por %p96, %p97
      %p99 = scmp.ne.s32.totalorder %s88, %s91
      %p100 = scmp.eq.s32.totalorder %s13, 3
      %p101 = por %p99, %p100
      %p102 = scmp.ne.s32.totalorder %s91, %s92
      %p103 = scmp.eq.s32.totalorder %s13, 0
      %p104 = por %p102, %p103
      %p105 = scmp.ne.s32.totalorder %s91, %s92
      %p106 = scmp.eq.s32.totalorder %s14, 3
      %p107 = por %p105, %p106
      %p109 = scmp.ne.s32.totalorder %s92, %s108
      %p110 = scmp.eq.s32.totalorder %s14, 0
      %p111 = por %p109, %p110
      %p112 = scmp.le.s32.totalorder 1, %s8
      %p113 = scmp.lt.s32.totalorder %s8, 5
      %p114 = pnand %p112, %p113
      %p115 = pneg %p114
      // Predicated region
      $region9: #{edge_encoding_forward.1} parent=5 // pred_check
        _
      $region10: #{edge_encoding_forward.1} parent=5 // pred_check_branch
        %117 = sbr.rel (%p114) target = $region12
      $region11: #{edge_encoding_forward.1} parent=5 // pred_region
        %s118 = ssub.s32 %s8, 1
      $region12: #{edge_encoding_forward.1} parent=5 // pred_fallthru
        _
      %p119 = scmp.lt.s32.totalorder %s8, 4
      // Predicated region
      $region13: #{edge_encoding_forward.1} parent=5 // pred_check
        %p120 = pneg %p119
      $region14: #{edge_encoding_forward.1} parent=5 // pred_check_branch
        %122 = sbr.rel (%p120) target = $region16
      $region15: #{edge_encoding_forward.1} parent=5 // pred_region
        // Predicated region
        $region17: #{edge_encoding_forward.1} parent=15 // pred_check
          %p123 = pneg %p42
        $region18: #{edge_encoding_forward.1} parent=15 // pred_check_branch
          %125 = sbr.rel (%p123) target = $region20
        $region19: #{edge_encoding_forward.1} parent=15 // pred_region
          %s126 = sand.u32 %s32, 1
          %s127 = sand.u32 %s32, 1
          %s128 = smul.addr %s127, 320
          %s129 = scalar_lea.vmem [#allocation2], %s128
          %s130 = smul.u32 8, %s15
          %s131 = smul.u32 2, %s16
          %s132 = smul.addr %s130, 2
          %s133 = sadd.s32 %s131, %s132
          %s134 = smul.addr %s133, 4
          %s135 = scalar_lea.vmem %s0, %s134
          // Predicated region
          $region21: #{edge_encoding_forward.1} parent=19 // pred_check
            _
          $region22: #{edge_encoding_forward.1} parent=19 // pred_check_branch
            %137 = sbr.rel (0) target = $region24
          $region23: #{edge_encoding_forward.1} parent=19 // pred_region
            // Predicated region
            $region25: #{edge_encoding_forward.1} parent=23 // pred_check
              _
            $region26: #{edge_encoding_forward.1} parent=23 // pred_check_branch
              %139 = sbr.rel (0) target = $region28
            $region27: #{edge_encoding_forward.1} parent=23 // pred_region
              // Predicated region
              $region40: #{edge_encoding_forward.1} parent=27 // pred_check
                _
              $region41: #{edge_encoding_forward.1} parent=27 // pred_check_branch
                %233 = sbr.rel (0) target = $region43
              $region42: #{edge_encoding_forward.1} parent=27 // pred_region
                loop: start=0, step=1, limit=1
                $region44: #{edge_encoding_forward.1} parent=42 // loop_pre_header
                  _
                $region45: #{edge_encoding_forward.1} parent=42 // loop_header
                  %s235 = sphi 0, %s239
                  %p236 = scmp.ge.s32.totalorder %s235, 1
                  %s240 = sphi %s135, %s135
                  %s241 = sphi %s129, %s129
                $region46: #{edge_encoding_forward.1} parent=42 // loop_header_branch
                  %238 = sbr.rel (%p236) target = $region50
                $region47: #{edge_encoding_forward.1} parent=42 // loop_body
                  %v242 = vld [vmem:[%s240] sm:$0xff]
                  %243 = vst [vmem:[%s241] sm:$0xff] %v242
                  %v244 = vld [vmem:[%s240 + $0x8] sm:$0xff]
                  %245 = vst [vmem:[%s241 + $0x8] sm:$0xff] %v244
                  %v246 = vld [vmem:[%s240 + $0x10] sm:$0xff]
                  %247 = vst [vmem:[%s241 + $0x10] sm:$0xff] %v246
                  %v248 = vld [vmem:[%s240 + $0x18] sm:$0xff]
                  %249 = vst [vmem:[%s241 + $0x18] sm:$0xff] %v248
                  %v250 = vld [vmem:[%s240 + $0x20] sm:$0xff]
                  %251 = vst [vmem:[%s241 + $0x20] sm:$0xff] %v250
                  %v252 = vld [vmem:[%s240 + $0x28] sm:$0xff]
                  %253 = vst [vmem:[%s241 + $0x28] sm:$0xff] %v252
                  %v254 = vld [vmem:[%s240 + $0x30] sm:$0xff]
                  %255 = vst [vmem:[%s241 + $0x30] sm:$0xff] %v254
                  %v256 = vld [vmem:[%s240 + $0x38] sm:$0xff]
                  %257 = vst [vmem:[%s241 + $0x38] sm:$0xff] %v256
                  %v258 = vld [vmem:[%s240 + $0x100] sm:$0xff]
                  %259 = vst [vmem:[%s241 + $0x40] sm:$0xff] %v258
                  %v260 = vld [vmem:[%s240 + $0x108] sm:$0xff]
                  %261 = vst [vmem:[%s241 + $0x48] sm:$0xff] %v260
                  %v262 = vld [vmem:[%s240 + $0x110] sm:$0xff]
                  %263 = vst [vmem:[%s241 + $0x50] sm:$0xff] %v262
                  %v264 = vld [vmem:[%s240 + $0x118] sm:$0xff]
                  %265 = vst [vmem:[%s241 + $0x58] sm:$0xff] %v264
                  %v266 = vld [vmem:[%s240 + $0x120] sm:$0xff]
                  %267 = vst [vmem:[%s241 + $0x60] sm:$0xff] %v266
                  %v268 = vld [vmem:[%s240 + $0x128] sm:$0xff]
                  %269 = vst [vmem:[%s241 + $0x68] sm:$0xff] %v268
                  %v270 = vld [vmem:[%s240 + $0x130] sm:$0xff]
                  %271 = vst [vmem:[%s241 + $0x70] sm:$0xff] %v270
                  %v272 = vld [vmem:[%s240 + $0x138] sm:$0xff]
                  %273 = vst [vmem:[%s241 + $0x78] sm:$0xff] %v272
                  %v274 = vld [vmem:[%s240 + $0x200] sm:$0xff]
                  %275 = vst [vmem:[%s241 + $0x80] sm:$0xff] %v274
                  %v276 = vld [vmem:[%s240 + $0x208] sm:$0xff]
                  %277 = vst [vmem:[%s241 + $0x88] sm:$0xff] %v276
                  %v278 = vld [vmem:[%s240 + $0x210] sm:$0xff]
                  %279 = vst [vmem:[%s241 + $0x90] sm:$0xff] %v278
                  %v280 = vld [vmem:[%s240 + $0x218] sm:$0xff]
                  %281 = vst [vmem:[%s241 + $0x98] sm:$0xff] %v280
                  %v282 = vld [vmem:[%s240 + $0x220] sm:$0xff]
                  %283 = vst [vmem:[%s241 + $0xa0] sm:$0xff] %v282
                  %v284 = vld [vmem:[%s240 + $0x228] sm:$0xff]
                  %285 = vst [vmem:[%s241 + $0xa8] sm:$0xff] %v284
                  %v286 = vld [vmem:[%s240 + $0x230] sm:$0xff]
                  %287 = vst [vmem:[%s241 + $0xb0] sm:$0xff] %v286
                  %v288 = vld [vmem:[%s240 + $0x238] sm:$0xff]
                  %289 = vst [vmem:[%s241 + $0xb8] sm:$0xff] %v288
                  %v290 = vld [vmem:[%s240 + $0x300] sm:$0xff]
                  %291 = vst [vmem:[%s241 + $0xc0] sm:$0xff] %v290
                  %v292 = vld [vmem:[%s240 + $0x308] sm:$0xff]
                  %293 = vst [vmem:[%s241 + $0xc8] sm:$0xff] %v292
                  %v294 = vld [vmem:[%s240 + $0x310] sm:$0xff]
                  %295 = vst [vmem:[%s241 + $0xd0] sm:$0xff] %v294
                  %v296 = vld [vmem:[%s240 + $0x318] sm:$0xff]
                  %297 = vst [vmem:[%s241 + $0xd8] sm:$0xff] %v296
                  %v298 = vld [vmem:[%s240 + $0x320] sm:$0xff]
                  %299 = vst [vmem:[%s241 + $0xe0] sm:$0xff] %v298
                  %v300 = vld [vmem:[%s240 + $0x328] sm:$0xff]
                  %301 = vst [vmem:[%s241 + $0xe8] sm:$0xff] %v300
                  %v302 = vld [vmem:[%s240 + $0x330] sm:$0xff]
                  %303 = vst [vmem:[%s241 + $0xf0] sm:$0xff] %v302
                  %v304 = vld [vmem:[%s240 + $0x338] sm:$0xff]
                  %305 = vst [vmem:[%s241 + $0xf8] sm:$0xff] %v304
                  %v306 = vld [vmem:[%s240 + $0x400] sm:$0xff]
                  %307 = vst [vmem:[%s241 + $0x100] sm:$0xff] %v306
                  %v308 = vld [vmem:[%s240 + $0x408] sm:$0xff]
                  %309 = vst [vmem:[%s241 + $0x108] sm:$0xff] %v308
                  %v310 = vld [vmem:[%s240 + $0x410] sm:$0xff]
                  %311 = vst [vmem:[%s241 + $0x110] sm:$0xff] %v310
                  %v312 = vld [vmem:[%s240 + $0x418] sm:$0xff]
                  %313 = vst [vmem:[%s241 + $0x118] sm:$0xff] %v312
                  %v314 = vld [vmem:[%s240 + $0x420] sm:$0xff]
                  %315 = vst [vmem:[%s241 + $0x120] sm:$0xff] %v314
                  %v316 = vld [vmem:[%s240 + $0x428] sm:$0xff]
                  %317 = vst [vmem:[%s241 + $0x128] sm:$0xff] %v316
                  %v318 = vld [vmem:[%s240 + $0x430] sm:$0xff]
                  %319 = vst [vmem:[%s241 + $0x130] sm:$0xff] %v318
                  %v320 = vld [vmem:[%s240 + $0x438] sm:$0xff]
                  %321 = vst [vmem:[%s241 + $0x138] sm:$0xff] %v320
                $region48: #{edge_encoding_forward.1} parent=42 // loop_footer
                  %s239 = sadd.s32 1, %s235
                $region49: #{edge_encoding_forward.1} parent=42 // loop_footer_branch
                  %234 = sbr.rel target = $region45
                $region50: #{edge_encoding_forward.1} parent=42 // loop_exit
                  _
              $region43: #{edge_encoding_forward.1} parent=27 // pred_fallthru
                _
              // Predicated region
              $region51: #{edge_encoding_forward.1} parent=27 // pred_check
                _
              $region52: #{edge_encoding_forward.1} parent=27 // pred_check_branch
                %323 = sbr.rel target = $region54
              $region53: #{edge_encoding_forward.1} parent=27 // pred_region
                _
              $region54: #{edge_encoding_forward.1} parent=27 // pred_fallthru
                _
            $region28: #{edge_encoding_forward.1} parent=23 // pred_fallthru
              _
            // Predicated region
            $region29: #{edge_encoding_forward.1} parent=23 // pred_check
              _
            $region30: #{edge_encoding_forward.1} parent=23 // pred_check_branch
              %141 = sbr.rel target = $region32
            $region31: #{edge_encoding_forward.1} parent=23 // pred_region
              %s143 = ssub.s32 256, 1
              loop: start=0, step=1, limit=1
              $region33: #{edge_encoding_forward.1} parent=31 // loop_pre_header
                _
              $region34: #{edge_encoding_forward.1} parent=31 // loop_header
                %s145 = sphi 0, %s149
                %p146 = scmp.ge.s32.totalorder %s145, 1
                %s150 = sphi %s135, %s135
                %s151 = sphi %s129, %s129
              $region35: #{edge_encoding_forward.1} parent=31 // loop_header_branch
                %148 = sbr.rel (%p146) target = $region39
              $region36: #{edge_encoding_forward.1} parent=31 // loop_body
                %v152 = vld [vmem:[%s150] sm:%s143]
                %153 = vst [vmem:[%s151] sm:%s143] %v152
                %v154 = vld [vmem:[%s150 + $0x8] sm:%s143]
                %155 = vst [vmem:[%s151 + $0x8] sm:%s143] %v154
                %v156 = vld [vmem:[%s150 + $0x10] sm:%s143]
                %157 = vst [vmem:[%s151 + $0x10] sm:%s143] %v156
                %v158 = vld [vmem:[%s150 + $0x18] sm:%s143]
                %159 = vst [vmem:[%s151 + $0x18] sm:%s143] %v158
                %v160 = vld [vmem:[%s150 + $0x20] sm:%s143]
                %161 = vst [vmem:[%s151 + $0x20] sm:%s143] %v160
                %v162 = vld [vmem:[%s150 + $0x28] sm:%s143]
                %163 = vst [vmem:[%s151 + $0x28] sm:%s143] %v162
                %v164 = vld [vmem:[%s150 + $0x30] sm:%s143]
                %165 = vst [vmem:[%s151 + $0x30] sm:%s143] %v164
                %v166 = vld [vmem:[%s150 + $0x38] sm:%s143]
                %167 = vst [vmem:[%s151 + $0x38] sm:%s143] %v166
                %v168 = vld [vmem:[%s150 + $0x100] sm:%s143]
                %169 = vst [vmem:[%s151 + $0x40] sm:%s143] %v168
                %v170 = vld [vmem:[%s150 + $0x108] sm:%s143]
                %171 = vst [vmem:[%s151 + $0x48] sm:%s143] %v170
                %v172 = vld [vmem:[%s150 + $0x110] sm:%s143]
                %173 = vst [vmem:[%s151 + $0x50] sm:%s143] %v172
                %v174 = vld [vmem:[%s150 + $0x118] sm:%s143]
                %175 = vst [vmem:[%s151 + $0x58] sm:%s143] %v174
                %v176 = vld [vmem:[%s150 + $0x120] sm:%s143]
                %177 = vst [vmem:[%s151 + $0x60] sm:%s143] %v176
                %v178 = vld [vmem:[%s150 + $0x128] sm:%s143]
                %179 = vst [vmem:[%s151 + $0x68] sm:%s143] %v178
                %v180 = vld [vmem:[%s150 + $0x130] sm:%s143]
                %181 = vst [vmem:[%s151 + $0x70] sm:%s143] %v180
                %v182 = vld [vmem:[%s150 + $0x138] sm:%s143]
                %183 = vst [vmem:[%s151 + $0x78] sm:%s143] %v182
                %v184 = vld [vmem:[%s150 + $0x200] sm:%s143]
                %185 = vst [vmem:[%s151 + $0x80] sm:%s143] %v184
                %v186 = vld [vmem:[%s150 + $0x208] sm:%s143]
                %187 = vst [vmem:[%s151 + $0x88] sm:%s143] %v186
                %v188 = vld [vmem:[%s150 + $0x210] sm:%s143]
                %189 = vst [vmem:[%s151 + $0x90] sm:%s143] %v188
                %v190 = vld [vmem:[%s150 + $0x218] sm:%s143]
                %191 = vst [vmem:[%s151 + $0x98] sm:%s143] %v190
                %v192 = vld [vmem:[%s150 + $0x220] sm:%s143]
                %193 = vst [vmem:[%s151 + $0xa0] sm:%s143] %v192
                %v194 = vld [vmem:[%s150 + $0x228] sm:%s143]
                %195 = vst [vmem:[%s151 + $0xa8] sm:%s143] %v194
                %v196 = vld [vmem:[%s150 + $0x230] sm:%s143]
                %197 = vst [vmem:[%s151 + $0xb0] sm:%s143] %v196
                %v198 = vld [vmem:[%s150 + $0x238] sm:%s143]
                %199 = vst [vmem:[%s151 + $0xb8] sm:%s143] %v198
                %v200 = vld [vmem:[%s150 + $0x300] sm:%s143]
                %201 = vst [vmem:[%s151 + $0xc0] sm:%s143] %v200
                %v202 = vld [vmem:[%s150 + $0x308] sm:%s143]
                %203 = vst [vmem:[%s151 + $0xc8] sm:%s143] %v202
                %v204 = vld [vmem:[%s150 + $0x310] sm:%s143]
                %205 = vst [vmem:[%s151 + $0xd0] sm:%s143] %v204
                %v206 = vld [vmem:[%s150 + $0x318] sm:%s143]
                %207 = vst [vmem:[%s151 + $0xd8] sm:%s143] %v206
                %v208 = vld [vmem:[%s150 + $0x320] sm:%s143]
                %209 = vst [vmem:[%s151 + $0xe0] sm:%s143] %v208
                %v210 = vld [vmem:[%s150 + $0x328] sm:%s143]
                %211 = vst [vmem:[%s151 + $0xe8] sm:%s143] %v210
                %v212 = vld [vmem:[%s150 + $0x330] sm:%s143]
                %213 = vst [vmem:[%s151 + $0xf0] sm:%s143] %v212
                %v214 = vld [vmem:[%s150 + $0x338] sm:%s143]
                %215 = vst [vmem:[%s151 + $0xf8] sm:%s143] %v214
                %v216 = vld [vmem:[%s150 + $0x400] sm:%s143]
                %217 = vst [vmem:[%s151 + $0x100] sm:%s143] %v216
                %v218 = vld [vmem:[%s150 + $0x408] sm:%s143]
                %219 = vst [vmem:[%s151 + $0x108] sm:%s143] %v218
                %v220 = vld [vmem:[%s150 + $0x410] sm:%s143]
                %221 = vst [vmem:[%s151 + $0x110] sm:%s143] %v220
                %v222 = vld [vmem:[%s150 + $0x418] sm:%s143]
                %223 = vst [vmem:[%s151 + $0x118] sm:%s143] %v222
                %v224 = vld [vmem:[%s150 + $0x420] sm:%s143]
                %225 = vst [vmem:[%s151 + $0x120] sm:%s143] %v224
                %v226 = vld [vmem:[%s150 + $0x428] sm:%s143]
                %227 = vst [vmem:[%s151 + $0x128] sm:%s143] %v226
                %v228 = vld [vmem:[%s150 + $0x430] sm:%s143]
                %229 = vst [vmem:[%s151 + $0x130] sm:%s143] %v228
                %v230 = vld [vmem:[%s150 + $0x438] sm:%s143]
                %231 = vst [vmem:[%s151 + $0x138] sm:%s143] %v230
              $region37: #{edge_encoding_forward.1} parent=31 // loop_footer
                %s149 = sadd.s32 1, %s145
              $region38: #{edge_encoding_forward.1} parent=31 // loop_footer_branch
                %144 = sbr.rel target = $region34
              $region39: #{edge_encoding_forward.1} parent=31 // loop_exit
                _
            $region32: #{edge_encoding_forward.1} parent=23 // pred_fallthru
              _
          $region24: #{edge_encoding_forward.1} parent=19 // pred_fallthru
            _
          %324 = vnop
        $region20: #{edge_encoding_forward.1} parent=15 // pred_fallthru
          _
        // Predicated region
        $region55: #{edge_encoding_forward.1} parent=15 // pred_check
          %p325 = pneg %p70
        $region56: #{edge_encoding_forward.1} parent=15 // pred_check_branch
          %327 = sbr.rel (%p325) target = $region58
        $region57: #{edge_encoding_forward.1} parent=15 // pred_region
          %s328 = smul.u32 8, %s15
          %s329 = smul.u32 2, %s16
          %p330 = scmp.lt.s32.totalorder %s328, 31
          %s331 = scalar_select %p330, %s328, 31
          %p332 = scmp.lt.s32.totalorder %s329, 1
          %s333 = scalar_select %p332, %s329, 1
          %s334 = smul.addr %s331, 2
          %s335 = sadd.s32 %s333, %s334
          %s336 = smul.addr %s335, 8
          %s337 = scalar_lea.vmem %s1, %s336
          %s338 = smul.u32 8, %s15
          %s339 = smul.u32 2, %s16
        $region58: #{edge_encoding_forward.1} parent=15 // pred_fallthru
          _
      $region16: #{edge_encoding_forward.1} parent=5 // pred_fallthru
        _
      %p340 = scmp.le.s32.totalorder 1, %s8
      %p341 = scmp.lt.s32.totalorder %s8, 5
      %p342 = pnand %p340, %p341
      %p343 = pneg %p342
      // Predicated region
      $region59: #{edge_encoding_forward.1} parent=5 // pred_check
        _
      $region60: #{edge_encoding_forward.1} parent=5 // pred_check_branch
        %345 = sbr.rel (%p342) target = $region62
      $region61: #{edge_encoding_forward.1} parent=5 // pred_region
        %s346 = ssub.s32 %s8, 1
        %s347 = sand.u32 %s35, 1
        %s348 = sand.u32 %s35, 1
        %s349 = smul.addr %s348, 320
        %s350 = scalar_lea.vmem [#allocation2], %s349
        // Predicated region
        $region63: #{edge_encoding_forward.1} parent=61 // pred_check
          %p351 = pneg %p48
        $region64: #{edge_encoding_forward.1} parent=61 // pred_check_branch
          %353 = sbr.rel (%p351) target = $region66
        $region65: #{edge_encoding_forward.1} parent=61 // pred_region
          _
        $region66: #{edge_encoding_forward.1} parent=61 // pred_fallthru
          _
        %s354 = sand.u32 %s35, 1
        %s355 = sand.u32 %s35, 1
        %s356 = smul.addr %s355, 320
        %s357 = scalar_lea.vmem [#allocation2], %s356
        %p358 = pneg %p48
        %p359 = pneg %p45
        %s360 = smul.u32 8, %s17
        %s361 = smul.u32 2, %s18
        %p362 = scmp.lt.s32.totalorder %s360, 31
        %s363 = scalar_select %p362, %s360, 31
        %p364 = scmp.lt.s32.totalorder %s361, 1
        %s365 = scalar_select %p364, %s361, 1
        %s366 = smul.addr %s363, 2
        %s367 = sadd.s32 %s365, %s366
        %s368 = smul.addr %s367, 8
        %s369 = scalar_lea.vmem %s1, %s368
        %p370 = pneg %p76
        %p371 = pneg %p73
        %p372 = pneg %p104
        %p373 = pneg %p101
        %s374 = smul.u32 8, %s17
        %s375 = smul.u32 2, %s18
        %p376 = scmp.lt.s32.totalorder %s374, 31
        %s377 = scalar_select %p376, %s374, 31
        %p378 = scmp.lt.s32.totalorder %s375, 1
        %s379 = scalar_select %p378, %s375, 1
        %s380 = smul.addr %s377, 2
        %s381 = sadd.s32 %s379, %s380
        %s382 = smul.addr %s381, 8
        %s383 = scalar_lea.vmem %s2, %s382
        %s384 = smul.u32 8, %s17
        %s385 = smul.u32 2, %s18
        %s386 = smul.u32 8, %s17
        %s387 = smul.u32 2, %s18
        %p388 = scmp.lt.s32.totalorder %s386, 31
        %s389 = scalar_select %p388, %s386, 31
        %p390 = scmp.lt.s32.totalorder %s387, 1
        %s391 = scalar_select %p390, %s387, 1
        %s392 = smul.addr %s389, 2
        %s393 = sadd.s32 %s391, %s392
        %s394 = smul.addr %s393, 8
        %s395 = scalar_lea.vmem %s1, %s394
        %s396 = smul.u32 8, %s17
        %s397 = smul.u32 2, %s18
        %s398 = smul.u32 8, %s17
        %s399 = smul.u32 2, %s18
        %p400 = scmp.lt.s32.totalorder %s398, 31
        %s401 = scalar_select %p400, %s398, 31
        %p402 = scmp.lt.s32.totalorder %s399, 1
        %s403 = scalar_select %p402, %s399, 1
        %s404 = smul.addr %s401, 2
        %s405 = sadd.s32 %s403, %s404
        %s406 = smul.addr %s405, 8
        %s407 = scalar_lea.vmem %s2, %s406
        %s408 = smul.u32 8, %s17
        %s409 = smul.u32 2, %s18
        %v410 = vld [vmem:[%s350] sm:$0xff]
        %v411 = vld [vmem:[%s350 + $0x8] sm:$0xff]
        %v412 = vld [vmem:[%s350 + $0x10] sm:$0xff]
        %v413 = vld [vmem:[%s350 + $0x18] sm:$0xff]
        %v414 = vld [vmem:[%s350 + $0x20] sm:$0xff]
        %v415 = vld [vmem:[%s350 + $0x28] sm:$0xff]
        %v416 = vld [vmem:[%s350 + $0x30] sm:$0xff]
        %v417 = vld [vmem:[%s350 + $0x38] sm:$0xff]
        %v418 = vunpack.c.l.bf16 %v410
        %v419 = vunpack.c.h.bf16 %v410
        %v420 = vunpack.c.l.bf16 %v411
        %v421 = vunpack.c.h.bf16 %v411
        %v422 = vunpack.c.l.bf16 %v412
        %v423 = vunpack.c.h.bf16 %v412
        %v424 = vunpack.c.l.bf16 %v413
        %v425 = vunpack.c.h.bf16 %v413
        %v426 = vunpack.c.l.bf16 %v414
        %v427 = vunpack.c.h.bf16 %v414
        %v428 = vunpack.c.l.bf16 %v415
        %v429 = vunpack.c.h.bf16 %v415
        %v430 = vunpack.c.l.bf16 %v416
        %v431 = vunpack.c.h.bf16 %v416
        %v432 = vunpack.c.l.bf16 %v417
        %v433 = vunpack.c.h.bf16 %v417
        %s434 = scalar_lea.vmem %s350, 64 [#allocation2]
        %v435 = vld [vmem:[%s434] sm:$0xff]
        %v436 = vld [vmem:[%s434 + $0x8] sm:$0xff]
        %v437 = vld [vmem:[%s434 + $0x10] sm:$0xff]
        %v438 = vld [vmem:[%s434 + $0x18] sm:$0xff]
        %v439 = vld [vmem:[%s434 + $0x20] sm:$0xff]
        %v440 = vld [vmem:[%s434 + $0x28] sm:$0xff]
        %v441 = vld [vmem:[%s434 + $0x30] sm:$0xff]
        %v442 = vld [vmem:[%s434 + $0x38] sm:$0xff]
        %v443 = vunpack.c.l.bf16 %v435
        %v444 = vunpack.c.h.bf16 %v435
        %v445 = vunpack.c.l.bf16 %v436
        %v446 = vunpack.c.h.bf16 %v436
        %v447 = vunpack.c.l.bf16 %v437
        %v448 = vunpack.c.h.bf16 %v437
        %v449 = vunpack.c.l.bf16 %v438
        %v450 = vunpack.c.h.bf16 %v438
        %v451 = vunpack.c.l.bf16 %v439
        %v452 = vunpack.c.h.bf16 %v439
        %v453 = vunpack.c.l.bf16 %v440
        %v454 = vunpack.c.h.bf16 %v440
        %v455 = vunpack.c.l.bf16 %v441
        %v456 = vunpack.c.h.bf16 %v441
        %v457 = vunpack.c.l.bf16 %v442
        %v458 = vunpack.c.h.bf16 %v442
        %s459 = scalar_lea.vmem %s350, 128 [#allocation2]
        %v460 = vld [vmem:[%s459] sm:$0xff]
        %v461 = vld [vmem:[%s459 + $0x8] sm:$0xff]
        %v462 = vld [vmem:[%s459 + $0x10] sm:$0xff]
        %v463 = vld [vmem:[%s459 + $0x18] sm:$0xff]
        %v464 = vld [vmem:[%s459 + $0x20] sm:$0xff]
        %v465 = vld [vmem:[%s459 + $0x28] sm:$0xff]
        %v466 = vld [vmem:[%s459 + $0x30] sm:$0xff]
        %v467 = vld [vmem:[%s459 + $0x38] sm:$0xff]
        %v468 = vunpack.c.l.bf16 %v460
        %v469 = vunpack.c.h.bf16 %v460
        %v470 = vunpack.c.l.bf16 %v461
        %v471 = vunpack.c.h.bf16 %v461
        %v472 = vunpack.c.l.bf16 %v462
        %v473 = vunpack.c.h.bf16 %v462
        %v474 = vunpack.c.l.bf16 %v463
        %v475 = vunpack.c.h.bf16 %v463
        %v476 = vunpack.c.l.bf16 %v464
        %v477 = vunpack.c.h.bf16 %v464
        %v478 = vunpack.c.l.bf16 %v465
        %v479 = vunpack.c.h.bf16 %v465
        %v480 = vunpack.c.l.bf16 %v466
        %v481 = vunpack.c.h.bf16 %v466
        %v482 = vunpack.c.l.bf16 %v467
        %v483 = vunpack.c.h.bf16 %v467
        %v484 = vadd.f32 %v418, %v468
        %v485 = vadd.f32 %v419, %v469
        %v486 = vadd.f32 %v420, %v470
        %v487 = vadd.f32 %v421, %v471
        %v488 = vadd.f32 %v422, %v472
        %v489 = vadd.f32 %v423, %v473
        %v490 = vadd.f32 %v424, %v474
        %v491 = vadd.f32 %v425, %v475
        %v492 = vadd.f32 %v426, %v476
        %v493 = vadd.f32 %v427, %v477
        %v494 = vadd.f32 %v428, %v478
        %v495 = vadd.f32 %v429, %v479
        %v496 = vadd.f32 %v430, %v480
        %v497 = vadd.f32 %v431, %v481
        %v498 = vadd.f32 %v432, %v482
        %v499 = vadd.f32 %v433, %v483
        %s500 = scalar_lea.vmem %s350, 192 [#allocation2]
        %v501 = vld [vmem:[%s500] sm:$0xff]
        %v502 = vld [vmem:[%s500 + $0x8] sm:$0xff]
        %v503 = vld [vmem:[%s500 + $0x10] sm:$0xff]
        %v504 = vld [vmem:[%s500 + $0x18] sm:$0xff]
        %v505 = vld [vmem:[%s500 + $0x20] sm:$0xff]
        %v506 = vld [vmem:[%s500 + $0x28] sm:$0xff]
        %v507 = vld [vmem:[%s500 + $0x30] sm:$0xff]
        %v508 = vld [vmem:[%s500 + $0x38] sm:$0xff]
        %v509 = vunpack.c.l.bf16 %v501
        %v510 = vunpack.c.h.bf16 %v501
        %v511 = vunpack.c.l.bf16 %v502
        %v512 = vunpack.c.h.bf16 %v502
        %v513 = vunpack.c.l.bf16 %v503
        %v514 = vunpack.c.h.bf16 %v503
        %v515 = vunpack.c.l.bf16 %v504
        %v516 = vunpack.c.h.bf16 %v504
        %v517 = vunpack.c.l.bf16 %v505
        %v518 = vunpack.c.h.bf16 %v505
        %v519 = vunpack.c.l.bf16 %v506
        %v520 = vunpack.c.h.bf16 %v506
        %v521 = vunpack.c.l.bf16 %v507
        %v522 = vunpack.c.h.bf16 %v507
        %v523 = vunpack.c.l.bf16 %v508
        %v524 = vunpack.c.h.bf16 %v508
        %v525 = vadd.f32 %v443, %v509
        %v526 = vadd.f32 %v444, %v510
        %v527 = vadd.f32 %v445, %v511
        %v528 = vadd.f32 %v446, %v512
        %v529 = vadd.f32 %v447, %v513
        %v530 = vadd.f32 %v448, %v514
        %v531 = vadd.f32 %v449, %v515
        %v532 = vadd.f32 %v450, %v516
        %v533 = vadd.f32 %v451, %v517
        %v534 = vadd.f32 %v452, %v518
        %v535 = vadd.f32 %v453, %v519
        %v536 = vadd.f32 %v454, %v520
        %v537 = vadd.f32 %v455, %v521
        %v538 = vadd.f32 %v456, %v522
        %v539 = vadd.f32 %v457, %v523
        %v540 = vadd.f32 %v458, %v524
        %s541 = scalar_lea.vmem %s350, 256 [#allocation2]
        %v542 = vld [vmem:[%s541] sm:$0xff]
        %v543 = vld [vmem:[%s541 + $0x8] sm:$0xff]
        %v544 = vld [vmem:[%s541 + $0x10] sm:$0xff]
        %v545 = vld [vmem:[%s541 + $0x18] sm:$0xff]
        %v546 = vld [vmem:[%s541 + $0x20] sm:$0xff]
        %v547 = vld [vmem:[%s541 + $0x28] sm:$0xff]
        %v548 = vld [vmem:[%s541 + $0x30] sm:$0xff]
        %v549 = vld [vmem:[%s541 + $0x38] sm:$0xff]
        %v550 = vunpack.c.l.bf16 %v542
        %v551 = vunpack.c.h.bf16 %v542
        %v552 = vunpack.c.l.bf16 %v543
        %v553 = vunpack.c.h.bf16 %v543
        %v554 = vunpack.c.l.bf16 %v544
        %v555 = vunpack.c.h.bf16 %v544
        %v556 = vunpack.c.l.bf16 %v545
        %v557 = vunpack.c.h.bf16 %v545
        %v558 = vunpack.c.l.bf16 %v546
        %v559 = vunpack.c.h.bf16 %v546
        %v560 = vunpack.c.l.bf16 %v547
        %v561 = vunpack.c.h.bf16 %v547
        %v562 = vunpack.c.l.bf16 %v548
        %v563 = vunpack.c.h.bf16 %v548
        %v564 = vunpack.c.l.bf16 %v549
        %v565 = vunpack.c.h.bf16 %v549
        %v566 = vadd.f32 %v484, %v550
        %v567 = vadd.f32 %v485, %v551
        %v568 = vadd.f32 %v486, %v552
        %v569 = vadd.f32 %v487, %v553
        %v570 = vadd.f32 %v488, %v554
        %v571 = vadd.f32 %v489, %v555
        %v572 = vadd.f32 %v490, %v556
        %v573 = vadd.f32 %v491, %v557
        %v574 = vadd.f32 %v492, %v558
        %v575 = vadd.f32 %v493, %v559
        %v576 = vadd.f32 %v494, %v560
        %v577 = vadd.f32 %v495, %v561
        %v578 = vadd.f32 %v496, %v562
        %v579 = vadd.f32 %v497, %v563
        %v580 = vadd.f32 %v498, %v564
        %v581 = vadd.f32 %v499, %v565
        %v582 = vadd.f32 %v566, %v525
        %v583 = vadd.f32 %v567, %v526
        %v584 = vadd.f32 %v568, %v527
        %v585 = vadd.f32 %v569, %v528
        %v586 = vadd.f32 %v570, %v529
        %v587 = vadd.f32 %v571, %v530
        %v588 = vadd.f32 %v572, %v531
        %v589 = vadd.f32 %v573, %v532
        %v590 = vadd.f32 %v574, %v533
        %v591 = vadd.f32 %v575, %v534
        %v592 = vadd.f32 %v576, %v535
        %v593 = vadd.f32 %v577, %v536
        %v594 = vadd.f32 %v578, %v537
        %v595 = vadd.f32 %v579, %v538
        %v596 = vadd.f32 %v580, %v539
        %v597 = vadd.f32 %v581, %v540
        %v598 = vld [vmem:[%s395] sm:$0xff]
        %v599 = vld [vmem:[%s395 + $0x8] sm:$0xff]
        %v600 = vld [vmem:[%s395 + $0x10] sm:$0xff]
        %v601 = vld [vmem:[%s395 + $0x18] sm:$0xff]
        %v602 = vld [vmem:[%s395 + $0x20] sm:$0xff]
        %v603 = vld [vmem:[%s395 + $0x28] sm:$0xff]
        %v604 = vld [vmem:[%s395 + $0x30] sm:$0xff]
        %v605 = vld [vmem:[%s395 + $0x38] sm:$0xff]
        %v606 = vld [vmem:[%s395 + $0x40] sm:$0xff]
        %v607 = vld [vmem:[%s395 + $0x48] sm:$0xff]
        %v608 = vld [vmem:[%s395 + $0x50] sm:$0xff]
        %v609 = vld [vmem:[%s395 + $0x58] sm:$0xff]
        %v610 = vld [vmem:[%s395 + $0x60] sm:$0xff]
        %v611 = vld [vmem:[%s395 + $0x68] sm:$0xff]
        %v612 = vld [vmem:[%s395 + $0x70] sm:$0xff]
        %v613 = vld [vmem:[%s395 + $0x78] sm:$0xff]
        %v614 = vmul.f32 %v582, %v598
        %v615 = vmul.f32 %v583, %v599
        %v616 = vmul.f32 %v584, %v600
        %v617 = vmul.f32 %v585, %v601
        %v618 = vmul.f32 %v586, %v602
        %v619 = vmul.f32 %v587, %v603
        %v620 = vmul.f32 %v588, %v604
        %v621 = vmul.f32 %v589, %v605
        %v622 = vmul.f32 %v590, %v606
        %v623 = vmul.f32 %v591, %v607
        %v624 = vmul.f32 %v592, %v608
        %v625 = vmul.f32 %v593, %v609
        %v626 = vmul.f32 %v594, %v610
        %v627 = vmul.f32 %v595, %v611
        %v628 = vmul.f32 %v596, %v612
        %v629 = vmul.f32 %v597, %v613
        %630 = vst [vmem:[%s407] sm:$0xff] %v614
        %631 = vst [vmem:[%s407 + $0x8] sm:$0xff] %v615
        %632 = vst [vmem:[%s407 + $0x10] sm:$0xff] %v616
        %633 = vst [vmem:[%s407 + $0x18] sm:$0xff] %v617
        %634 = vst [vmem:[%s407 + $0x20] sm:$0xff] %v618
        %635 = vst [vmem:[%s407 + $0x28] sm:$0xff] %v619
        %636 = vst [vmem:[%s407 + $0x30] sm:$0xff] %v620
        %637 = vst [vmem:[%s407 + $0x38] sm:$0xff] %v621
        %638 = vst [vmem:[%s407 + $0x40] sm:$0xff] %v622
        %639 = vst [vmem:[%s407 + $0x48] sm:$0xff] %v623
        %640 = vst [vmem:[%s407 + $0x50] sm:$0xff] %v624
        %641 = vst [vmem:[%s407 + $0x58] sm:$0xff] %v625
        %642 = vst [vmem:[%s407 + $0x60] sm:$0xff] %v626
        %643 = vst [vmem:[%s407 + $0x68] sm:$0xff] %v627
        %644 = vst [vmem:[%s407 + $0x70] sm:$0xff] %v628
        %645 = vst [vmem:[%s407 + $0x78] sm:$0xff] %v629
        %s646 = smul.u32 8, %s17
        %s647 = smul.u32 2, %s18
        %p648 = scmp.lt.s32.totalorder %s646, 31
        %s649 = scalar_select %p648, %s646, 31
        %p650 = scmp.lt.s32.totalorder %s647, 1
        %s651 = scalar_select %p650, %s647, 1
        %s652 = smul.addr %s649, 2
        %s653 = sadd.s32 %s651, %s652
        %s654 = smul.addr %s653, 8
        %s655 = scalar_lea.vmem %s2, %s654
        // Predicated region
        $region67: #{edge_encoding_forward.1} parent=61 // pred_check
          %p656 = pneg %p101
        $region68: #{edge_encoding_forward.1} parent=61 // pred_check_branch
          %658 = sbr.rel (%p656) target = $region70
        $region69: #{edge_encoding_forward.1} parent=61 // pred_region
          %s659 = smul.u32 8, %s17
          %s660 = smul.u32 2, %s18
        $region70: #{edge_encoding_forward.1} parent=61 // pred_fallthru
          _
      $region62: #{edge_encoding_forward.1} parent=5 // pred_fallthru
        _
      %p661 = scmp.le.s32.totalorder 2, %s8
      // Predicated region
      $region71: #{edge_encoding_forward.1} parent=5 // pred_check
        %p662 = pneg %p661
      $region72: #{edge_encoding_forward.1} parent=5 // pred_check_branch
        %664 = sbr.rel (%p662) target = $region74
      $region73: #{edge_encoding_forward.1} parent=5 // pred_region
        %s665 = ssub.s32 %s8, 2
        // Predicated region
        $region75: #{edge_encoding_forward.1} parent=73 // pred_check
          %p666 = pneg %p107
        $region76: #{edge_encoding_forward.1} parent=73 // pred_check_branch
          %668 = sbr.rel (%p666) target = $region78
        $region77: #{edge_encoding_forward.1} parent=73 // pred_region
          %s669 = smul.u32 8, %s19
          %s670 = smul.u32 2, %s20
          %p671 = scmp.lt.s32.totalorder %s669, 31
          %s672 = scalar_select %p671, %s669, 31
          %p673 = scmp.lt.s32.totalorder %s670, 1
          %s674 = scalar_select %p673, %s670, 1
          %s675 = smul.addr %s672, 2
          %s676 = sadd.s32 %s674, %s675
          %s677 = smul.addr %s676, 8
          %s678 = scalar_lea.vmem %s2, %s677
        $region78: #{edge_encoding_forward.1} parent=73 // pred_fallthru
          _
      $region74: #{edge_encoding_forward.1} parent=5 // pred_fallthru
        _
    $region6: #{edge_encoding_forward.1} parent=1 // loop_footer
      %s12 = sadd.s32 1, %s8
    $region7: #{edge_encoding_forward.1} parent=1 // loop_footer_branch
      %7 = sbr.rel target = $region3
    $region8: #{edge_encoding_forward.1} parent=1 // loop_exit
      _

</llo_original>
